<compile_context>
chip_gen: v5e
topology: v5e:2x2
jax: 0.10.0
libtpu: 0.0.40
codegen_flags: <defaults>
</compile_context>

<pallas_src>
import functools

import jax
import jax.numpy as jnp
from jax import lax
from jax.experimental import pallas as pl
from jax.experimental.pallas import tpu as pltpu


def _round_up(x, m):
    return ((x + m - 1) // m) * m


def _lstm_kernel(xproj_ref, whh_ref, wout_ref, bout_ref, out_ref,
                 h_ref, c_ref, *, H, T, TC, unroll):
    """One (batch-block, time-chunk) grid step of the LSTM recurrence.

    xproj_ref : (TC, TB, GW)  hoisted x @ W_ih + b for this chunk (streamed)
    whh_ref   : (H, GW)       hidden->gates weights, gates packed [i|f|g|o|pad]
    wout_ref  : (H, OP)       output Linear weight (lane-dense, zero-padded)
    bout_ref  : (1, OP)       output Linear bias
    out_ref   : (TB, OP)      h_T @ W_out + b_out, written on the last chunk
    h_ref/c_ref : (TB, H)     persistent VMEM carry across time chunks
    """
    t_blk = pl.program_id(1)
    nt = pl.num_programs(1)
    TB = h_ref.shape[0]
    GW = whh_ref.shape[1]

    # New batch block starts -> reset the carried state.
    @pl.when(t_blk == 0)
    def _():
        h_ref[...] = jnp.zeros_like(h_ref)
        c_ref[...] = jnp.zeros_like(c_ref)

    # TODO(synk): on v5e a weight-stationary MXU drive (pltpu.matmul_push_rhs
    # once, matmul_acc_lhs per step) would avoid re-streaming W_hh every step.
    whh = whh_ref[...]                                           # (H, GW)

    # Lane mask selecting the g-gate block (tanh) vs. the sigmoid gates:
    # one sigmoid pass + one tanh pass over the packed (TB, GW) gates instead
    # of four per-gate transcendental passes on the latency-critical chain.
    lane = lax.broadcasted_iota(jnp.int32, (TB, GW), 1)
    is_g_lane = (lane >= 2 * H) & (lane < 3 * H)

    ragged = (T % TC) != 0
    t0 = t_blk * TC

    def step(s, carry):
        h, c = carry                                             # (TB, H) f32
        gates = xproj_ref[s].astype(jnp.float32) + jnp.dot(
            h.astype(whh.dtype), whh, preferred_element_type=jnp.float32)
        act = jnp.where(is_g_lane, jnp.tanh(gates), jax.nn.sigmoid(gates))
        i_g = act[:, 0 * H:1 * H]
        f_g = act[:, 1 * H:2 * H]
        g_g = act[:, 2 * H:3 * H]
        o_g = act[:, 3 * H:4 * H]
        c_new = f_g * c + i_g * g_g
        h_new = o_g * jnp.tanh(c_new)
        if ragged:
            # Padded tail timesteps leave the state untouched.
            keep = (t0 + s) < T
            h_new = jnp.where(keep, h_new, h)
            c_new = jnp.where(keep, c_new, c)
        return (h_new, c_new)

    h, c = lax.fori_loop(0, TC, step, (h_ref[...], c_ref[...]), unroll=unroll)
    h_ref[...] = h
    c_ref[...] = c

    # Output Linear on h_T, lane-dense store, only on the last time chunk.
    @pl.when(t_blk == nt - 1)
    def _():
        wout = wout_ref[...]
        out_ref[...] = (
            jnp.dot(h_ref[...].astype(wout.dtype), wout,
                    preferred_element_type=jnp.float32)
            + bout_ref[...].astype(jnp.float32)).astype(out_ref.dtype)


def lstm_forward(x_bct, params, *, num_actors, pred_len, hidden_dim,
                 compute_dtype=jnp.float32):
    """x_bct: (B, C, T) as in the PyTorch module. Returns (B, num_actors, pred_len).

    compute_dtype=jnp.bfloat16 is recommended on v6e/v7x (weights + streamed
    xproj); state/accumulation stay f32.  Default f32 keeps numerics exact.
    """
    w_ih, w_hh, b_gates, w_out, b_out = params
    B, I, T = x_bct.shape
    H = hidden_dim
    O = num_actors * pred_len
    f32 = jnp.float32

    GW = _round_up(4 * H, 128)            # packed gate lane width [i|f|g|o|pad]
    OP = _round_up(O, 128)                # lane-dense output width

    # ---- Batch block: fill the MXU M dimension (up to 128) but keep >= 2
    #      grid programs when batch allows (v7x has 2 TensorCores on "parallel").
    B8 = _round_up(B, 8)
    TB = min(128, B8)
    if B8 > 8 and B8 // TB < 2:
        TB = max(8, _round_up(B8 // 2, 8))
    B_pad = _round_up(B8, TB)
    nb = B_pad // TB

    # ---- Time chunk: stream xproj in O(chunk) VMEM blocks; bound the
    #      double-buffered block to ~4 MiB so it scales to long T on v7x.
    itemsize = jnp.dtype(compute_dtype).itemsize
    bytes_per_step = TB * GW * itemsize
    tc_cap = max(1, (4 * 2**20) // (2 * bytes_per_step))
    TC = max(1, min(T, 64, tc_cap))
    nt = -(-T // TC)
    T_pad = nt * TC

    # Full unroll only for tiny blocks; bounded unroll otherwise (vreg pressure).
    unroll = TC if (TB * GW) <= (8 * 512) else min(4, TC)

    # ---- Weights: gates stay packed at natural H offsets (PyTorch order
    #      i,f,g,o); only the tail is zero-padded to GW lanes, so exact.
    w_ih_p = jnp.pad(w_ih.astype(f32), ((0, 0), (0, GW - 4 * H)))        # (I, GW)
    b_p = jnp.pad(b_gates.astype(f32), ((0, 0), (0, GW - 4 * H)))        # (1, GW)
    w_hh_p = jnp.pad(w_hh.astype(f32), ((0, 0), (0, GW - 4 * H)))        # (H, GW)
    w_out_p = jnp.pad(w_out.astype(f32), ((0, 0), (0, OP - O)))          # (H, OP)
    b_out_p = jnp.pad(b_out.astype(f32), ((0, 0), (0, OP - O)))          # (1, OP)

    # ---- Hoisted input projection in XLA (off the serial chain).  Time-major
    #      so each kernel step reads a clean (TB, GW) slab: xproj_ref[s].
    x_tbi = jnp.transpose(x_bct, (2, 0, 1)).astype(f32)                  # (T, B, I)
    xproj = jnp.einsum('tbi,ig->tbg', x_tbi, w_ih_p) + b_p               # (T, B, GW)
    xproj = jnp.pad(xproj, ((0, T_pad - T), (0, B_pad - B), (0, 0)))
    xproj = xproj.astype(compute_dtype)
    w_hh_c = w_hh_p.astype(compute_dtype)
    w_out_c = w_out_p.astype(compute_dtype)

    # ---- VMEM budget (double-buffered inputs + output block + carry), with
    #      headroom, capped at 48 MiB so the same config fits v7x (64 MiB).
    budget = (2 * TC * TB * GW * itemsize              # xproj block (x2 bufs)
              + 2 * (H * GW + H * OP) * itemsize       # W_hh, W_out (x2 bufs)
              + 2 * OP * 4                             # b_out
              + 2 * TB * OP * 4                        # output block
              + 2 * TB * H * 4)                        # h/c carry
    vmem_limit = int(min(48 * 2**20, max(16 * 2**20, budget + 8 * 2**20)))

    kernel = functools.partial(_lstm_kernel, H=H, T=T, TC=TC, unroll=unroll)

    out = pl.pallas_call(
        kernel,
        out_shape=jax.ShapeDtypeStruct((B_pad, OP), f32),
        grid=(nb, nt),
        in_specs=[
            # Streamed xproj chunk (pipelined against the recurrence).
            pl.BlockSpec((TC, TB, GW), lambda b, t: (t, b, 0)),
            # Loop-invariant operands (index_map constant -> DMA'd once; could
            # additionally be single-buffered via pipeline_mode=pl.Buffered(1)
            # to save VMEM at large H).
            pl.BlockSpec((H, GW), lambda b, t: (0, 0)),
            pl.BlockSpec((H, OP), lambda b, t: (0, 0)),
            pl.BlockSpec((1, OP), lambda b, t: (0, 0)),
        ],
        out_specs=pl.BlockSpec((TB, OP), lambda b, t: (b, 0)),
        scratch_shapes=[
            pltpu.VMEM((TB, H), f32),   # h carry (persists across time chunks)
            pltpu.VMEM((TB, H), f32),   # c carry
        ],
        compiler_params=pltpu.CompilerParams(
            dimension_semantics=("parallel", "arbitrary"),
            vmem_limit_bytes=vmem_limit),
    )(xproj, w_hh_c, w_out_c, b_out_p)

    # Slice away batch / lane padding, then view as (B, num_actors, pred_len).
    return out[:B, :O].reshape(B, num_actors, pred_len)


def init_params(key, input_size, hidden_dim, output_size):
    """Deterministic synthetic init mirroring PyTorch shapes.

    nn.LSTM default init: U(-1/sqrt(H), 1/sqrt(H)) for all weights/biases.
    Output Linear: kaiming-uniform weight, zero bias (module's _initialize_weights).
    """
    k1, k2, k3, k4, k5 = jax.random.split(key, 5)
    bound = 1.0 / jnp.sqrt(hidden_dim)
    # Stored pre-transposed for right-matmul inside the kernel (gate order i,f,g,o).
    w_ih = jax.random.uniform(k1, (input_size, 4 * hidden_dim), jnp.float32,
                              -bound, bound)
    w_hh = jax.random.uniform(k2, (hidden_dim, 4 * hidden_dim), jnp.float32,
                              -bound, bound)
    b_ih = jax.random.uniform(k3, (1, 4 * hidden_dim), jnp.float32, -bound, bound)
    b_hh = jax.random.uniform(k4, (1, 4 * hidden_dim), jnp.float32, -bound, bound)
    b_gates = b_ih + b_hh

    # kaiming_uniform_ default a=sqrt(5) -> bound = 1/sqrt(fan_in).
    kbound = 1.0 / jnp.sqrt(hidden_dim)
    w_out = jax.random.uniform(k5, (hidden_dim, output_size), jnp.float32,
                               -kbound, kbound)
    b_out = jnp.zeros((1, output_size), jnp.float32)
    return (w_ih, w_hh, b_gates, w_out, b_out)


def lstm_reference(x_bct, params, *, num_actors, pred_len, hidden_dim):
    """Pure-JAX reference for correctness checking."""
    w_ih, w_hh, b_gates, w_out, b_out = params
    B, I, T = x_bct.shape
    H = hidden_dim
    x_bti = jnp.transpose(x_bct, (0, 2, 1)).astype(jnp.float32)  # (B, T, I)

    def step(carry, x_t):
        h, c = carry
        gates = x_t @ w_ih + h @ w_hh + b_gates
        i_g = jax.nn.sigmoid(gates[:, 0 * H:1 * H])
        f_g = jax.nn.sigmoid(gates[:, 1 * H:2 * H])
        g_g = jnp.tanh(gates[:, 2 * H:3 * H])
        o_g = jax.nn.sigmoid(gates[:, 3 * H:4 * H])
        c_new = f_g * c + i_g * g_g
        h_new = o_g * jnp.tanh(c_new)
        return (h_new, c_new), None

    h0 = jnp.zeros((B, H), jnp.float32)
    c0 = jnp.zeros((B, H), jnp.float32)
    (h_T, _), _ = lax.scan(step, (h0, c0), jnp.swapaxes(x_bti, 0, 1))
    out = h_T @ w_out + b_out
    return out.reshape(B, num_actors, pred_len)


if __name__ == "__main__":
    # Small shapes consistent with the module:
    #   num_actors=4, len(config.phases)=2 -> input_size = 4 + 2 + 2 = 8
    batch_size = 2
    num_actors = 4
    num_phases = 2
    input_size = num_actors + num_phases + 2   # 8
    seq_len = 8
    hidden_dim = 32
    pred_len = 4
    output_size = num_actors * pred_len        # 16

    key = jax.random.PRNGKey(0)
    kx, kp = jax.random.split(key)

    # Input in PyTorch convention: (batch, num_actors + num_temporal, seq_len)
    x = jax.random.normal(kx, (batch_size, input_size, seq_len), jnp.float32)
    params = init_params(kp, input_size, hidden_dim, output_size)

    out = lstm_forward(x, params, num_actors=num_actors, pred_len=pred_len,
                       hidden_dim=hidden_dim)
    out = jax.block_until_ready(out)

    ref = lstm_reference(x, params, num_actors=num_actors, pred_len=pred_len,
                         hidden_dim=hidden_dim)
    assert out.shape == (batch_size, num_actors, pred_len)
    max_err = float(jnp.max(jnp.abs(out - ref)))
    assert max_err < 1e-4, f"mismatch vs JAX reference (max abs err {max_err})"

    print("KERNEL_OK")
</pallas_src>

<mosaic_0001>
module attributes {stable_mosaic.version = 11 : i64} {
  func.func @_lstm_kernel(%arg0: i32, %arg1: i32, %arg2: memref<8x8x128xf32, #tpu.memory_space<vmem>>, %arg3: memref<32x128xf32, #tpu.memory_space<vmem>>, %arg4: memref<32x128xf32, #tpu.memory_space<vmem>>, %arg5: memref<1x128xf32, #tpu.memory_space<vmem>>, %arg6: memref<8x128xf32, #tpu.memory_space<vmem>>, %arg7: memref<8x32xf32, #tpu.memory_space<vmem>>, %arg8: memref<8x32xf32, #tpu.memory_space<vmem>>) attributes {dimension_semantics = [#tpu.dimension_semantics<parallel>, #tpu.dimension_semantics<arbitrary>], iteration_bounds = array<i64: 1, 1>, scalar_prefetch = 0 : i64, scratch_operands = 2 : i64, tpu.core_type = #tpu.core_type<tc>, window_params = [{transform_indices = @transform_0, window_bounds = array<i64: 8, 8, 128>}, {pipeline_mode = #tpu.pipeline_mode<synchronous>, transform_indices = @transform_1, window_bounds = array<i64: 32, 128>}, {pipeline_mode = #tpu.pipeline_mode<synchronous>, transform_indices = @transform_2, window_bounds = array<i64: 32, 128>}, {pipeline_mode = #tpu.pipeline_mode<synchronous>, transform_indices = @transform_3, window_bounds = array<i64: 1, 128>}, {transform_indices = @transform_4, window_bounds = array<i64: 8, 128>}]} {
    %c0_i32 = arith.constant 0 : i32
    %0 = arith.cmpi eq, %arg1, %c0_i32 : i32
    %1 = arith.extui %0 : i1 to i32
    %c0_i32_0 = arith.constant 0 : i32
    %2 = arith.cmpi ne, %1, %c0_i32_0 : i32
    scf.if %2 {
      %cst_44 = arith.constant 0.000000e+00 : f32
      %185 = vector.broadcast %cst_44 : f32 to vector<8x32xf32>
      %c0_45 = arith.constant 0 : index
      %c0_46 = arith.constant 0 : index
      %186 = vector.load %arg7[%c0_45, %c0_46] : memref<8x32xf32, #tpu.memory_space<vmem>>, vector<8x32xf32>
      tpu.vector_store %arg7[%c0_45, %c0_46], %185 {strides = array<i32>} : memref<8x32xf32, #tpu.memory_space<vmem>>, vector<8x32xf32>,
      %cst_47 = arith.constant 0.000000e+00 : f32
      %187 = vector.broadcast %cst_47 : f32 to vector<8x32xf32>
      %c0_48 = arith.constant 0 : index
      %c0_49 = arith.constant 0 : index
      %188 = vector.load %arg8[%c0_48, %c0_49] : memref<8x32xf32, #tpu.memory_space<vmem>>, vector<8x32xf32>
      tpu.vector_store %arg8[%c0_48, %c0_49], %187 {strides = array<i32>} : memref<8x32xf32, #tpu.memory_space<vmem>>, vector<8x32xf32>,
    } else {
    }
    %c0 = arith.constant 0 : index
    %c0_1 = arith.constant 0 : index
    %3 = vector.load %arg3[%c0, %c0_1] : memref<32x128xf32, #tpu.memory_space<vmem>>, vector<32x128xf32>
    %4 = tpu.iota {dimensions = array<i32: 1>} : vector<8x128xi32>
    %c64_i32 = arith.constant 64 : i32
    %5 = vector.broadcast %c64_i32 : i32 to vector<8x128xi32>
    %6 = arith.cmpi sge, %4, %5 : vector<8x128xi32>
    %c96_i32 = arith.constant 96 : i32
    %7 = vector.broadcast %c96_i32 : i32 to vector<8x128xi32>
    %8 = arith.cmpi slt, %4, %7 : vector<8x128xi32>
    %9 = arith.andi %6, %8 : vector<8x128xi1>
    %c0_2 = arith.constant 0 : index
    %c0_3 = arith.constant 0 : index
    %10 = vector.load %arg7[%c0_2, %c0_3] : memref<8x32xf32, #tpu.memory_space<vmem>>, vector<8x32xf32>
    %c0_4 = arith.constant 0 : index
    %c0_5 = arith.constant 0 : index
    %11 = vector.load %arg8[%c0_4, %c0_5] : memref<8x32xf32, #tpu.memory_space<vmem>>, vector<8x32xf32>
    %c0_i32_6 = arith.constant 0 : i32
    %12 = arith.index_cast %c0_i32_6 : i32 to index
    %c0_7 = arith.constant 0 : index
    %c0_8 = arith.constant 0 : index
    %13 = vector.load %arg2[%12, %c0_7, %c0_8] : memref<8x8x128xf32, #tpu.memory_space<vmem>>, vector<1x8x128xf32>
    %14 = vector.shape_cast %13 : vector<1x8x128xf32> to vector<8x128xf32>
    %cst = arith.constant dense<0.000000e+00> : vector<8x128xf32>
    %15 = tpu.matmul %10, %3, %cst {dimension_numbers = #tpu.dot_dimension_numbers<[1], [0], [0], [1], [0, 0, 1, 1], [], []>} : vector<8x32xf32>, vector<32x128xf32>, vector<8x128xf32> -> vector<8x128xf32>
    %16 = arith.addf %14, %15 : vector<8x128xf32>
    %17 = math.tanh %16 : vector<8x128xf32>
    %18 = arith.negf %16 : vector<8x128xf32>
    %19 = math.exp %18 : vector<8x128xf32>
    %cst_9 = arith.constant 1.000000e+00 : f32
    %20 = vector.broadcast %cst_9 : f32 to vector<8x128xf32>
    %21 = arith.addf %20, %19 : vector<8x128xf32>
    %22 = arith.divf %20, %21 : vector<8x128xf32>
    %23 = arith.select %9, %17, %22 : vector<8x128xi1>, vector<8x128xf32>
    %24 = vector.extract_strided_slice %23 {offsets = [0, 0], sizes = [8, 32], strides = [1, 1]} : vector<8x128xf32> to vector<8x32xf32>
    %25 = vector.extract_strided_slice %23 {offsets = [0, 32], sizes = [8, 32], strides = [1, 1]} : vector<8x128xf32> to vector<8x32xf32>
    %26 = vector.extract_strided_slice %23 {offsets = [0, 64], sizes = [8, 32], strides = [1, 1]} : vector<8x128xf32> to vector<8x32xf32>
    %27 = vector.extract_strided_slice %23 {offsets = [0, 96], sizes = [8, 32], strides = [1, 1]} : vector<8x128xf32> to vector<8x32xf32>
    %28 = arith.mulf %25, %11 : vector<8x32xf32>
    %29 = arith.mulf %24, %26 : vector<8x32xf32>
    %30 = arith.addf %28, %29 : vector<8x32xf32>
    %31 = math.tanh %30 : vector<8x32xf32>
    %32 = arith.mulf %27, %31 : vector<8x32xf32>
    %c1_i32 = arith.constant 1 : i32
    %33 = arith.index_cast %c1_i32 : i32 to index
    %c0_10 = arith.constant 0 : index
    %c0_11 = arith.constant 0 : index
    %34 = vector.load %arg2[%33, %c0_10, %c0_11] : memref<8x8x128xf32, #tpu.memory_space<vmem>>, vector<1x8x128xf32>
    %35 = vector.shape_cast %34 : vector<1x8x128xf32> to vector<8x128xf32>
    %cst_12 = arith.constant dense<0.000000e+00> : vector<8x128xf32>
    %36 = tpu.matmul %32, %3, %cst_12 {dimension_numbers = #tpu.dot_dimension_numbers<[1], [0], [0], [1], [0, 0, 1, 1], [], []>} : vector<8x32xf32>, vector<32x128xf32>, vector<8x128xf32> -> vector<8x128xf32>
    %37 = arith.addf %35, %36 : vector<8x128xf32>
    %38 = math.tanh %37 : vector<8x128xf32>
    %39 = arith.negf %37 : vector<8x128xf32>
    %40 = math.exp %39 : vector<8x128xf32>
    %cst_13 = arith.constant 1.000000e+00 : f32
    %41 = vector.broadcast %cst_13 : f32 to vector<8x128xf32>
    %42 = arith.addf %41, %40 : vector<8x128xf32>
    %43 = arith.divf %41, %42 : vector<8x128xf32>
    %44 = arith.select %9, %38, %43 : vector<8x128xi1>, vector<8x128xf32>
    %45 = vector.extract_strided_slice %44 {offsets = [0, 0], sizes = [8, 32], strides = [1, 1]} : vector<8x128xf32> to vector<8x32xf32>
    %46 = vector.extract_strided_slice %44 {offsets = [0, 32], sizes = [8, 32], strides = [1, 1]} : vector<8x128xf32> to vector<8x32xf32>
    %47 = vector.extract_strided_slice %44 {offsets = [0, 64], sizes = [8, 32], strides = [1, 1]} : vector<8x128xf32> to vector<8x32xf32>
    %48 = vector.extract_strided_slice %44 {offsets = [0, 96], sizes = [8, 32], strides = [1, 1]} : vector<8x128xf32> to vector<8x32xf32>
    %49 = arith.mulf %46, %30 : vector<8x32xf32>
    %50 = arith.mulf %45, %47 : vector<8x32xf32>
    %51 = arith.addf %49, %50 : vector<8x32xf32>
    %52 = math.tanh %51 : vector<8x32xf32>
    %53 = arith.mulf %48, %52 : vector<8x32xf32>
    %c2_i32 = arith.constant 2 : i32
    %54 = arith.index_cast %c2_i32 : i32 to index
    %c0_14 = arith.constant 0 : index
    %c0_15 = arith.constant 0 : index
    %55 = vector.load %arg2[%54, %c0_14, %c0_15] : memref<8x8x128xf32, #tpu.memory_space<vmem>>, vector<1x8x128xf32>
    %56 = vector.shape_cast %55 : vector<1x8x128xf32> to vector<8x128xf32>
    %cst_16 = arith.constant dense<0.000000e+00> : vector<8x128xf32>
    %57 = tpu.matmul %53, %3, %cst_16 {dimension_numbers = #tpu.dot_dimension_numbers<[1], [0], [0], [1], [0, 0, 1, 1], [], []>} : vector<8x32xf32>, vector<32x128xf32>, vector<8x128xf32> -> vector<8x128xf32>
    %58 = arith.addf %56, %57 : vector<8x128xf32>
    %59 = math.tanh %58 : vector<8x128xf32>
    %60 = arith.negf %58 : vector<8x128xf32>
    %61 = math.exp %60 : vector<8x128xf32>
    %cst_17 = arith.constant 1.000000e+00 : f32
    %62 = vector.broadcast %cst_17 : f32 to vector<8x128xf32>
    %63 = arith.addf %62, %61 : vector<8x128xf32>
    %64 = arith.divf %62, %63 : vector<8x128xf32>
    %65 = arith.select %9, %59, %64 : vector<8x128xi1>, vector<8x128xf32>
    %66 = vector.extract_strided_slice %65 {offsets = [0, 0], sizes = [8, 32], strides = [1, 1]} : vector<8x128xf32> to vector<8x32xf32>
    %67 = vector.extract_strided_slice %65 {offsets = [0, 32], sizes = [8, 32], strides = [1, 1]} : vector<8x128xf32> to vector<8x32xf32>
    %68 = vector.extract_strided_slice %65 {offsets = [0, 64], sizes = [8, 32], strides = [1, 1]} : vector<8x128xf32> to vector<8x32xf32>
    %69 = vector.extract_strided_slice %65 {offsets = [0, 96], sizes = [8, 32], strides = [1, 1]} : vector<8x128xf32> to vector<8x32xf32>
    %70 = arith.mulf %67, %51 : vector<8x32xf32>
    %71 = arith.mulf %66, %68 : vector<8x32xf32>
    %72 = arith.addf %70, %71 : vector<8x32xf32>
    %73 = math.tanh %72 : vector<8x32xf32>
    %74 = arith.mulf %69, %73 : vector<8x32xf32>
    %c3_i32 = arith.constant 3 : i32
    %75 = arith.index_cast %c3_i32 : i32 to index
    %c0_18 = arith.constant 0 : index
    %c0_19 = arith.constant 0 : index
    %76 = vector.load %arg2[%75, %c0_18, %c0_19] : memref<8x8x128xf32, #tpu.memory_space<vmem>>, vector<1x8x128xf32>
    %77 = vector.shape_cast %76 : vector<1x8x128xf32> to vector<8x128xf32>
    %cst_20 = arith.constant dense<0.000000e+00> : vector<8x128xf32>
    %78 = tpu.matmul %74, %3, %cst_20 {dimension_numbers = #tpu.dot_dimension_numbers<[1], [0], [0], [1], [0, 0, 1, 1], [], []>} : vector<8x32xf32>, vector<32x128xf32>, vector<8x128xf32> -> vector<8x128xf32>
    %79 = arith.addf %77, %78 : vector<8x128xf32>
    %80 = math.tanh %79 : vector<8x128xf32>
    %81 = arith.negf %79 : vector<8x128xf32>
    %82 = math.exp %81 : vector<8x128xf32>
    %cst_21 = arith.constant 1.000000e+00 : f32
    %83 = vector.broadcast %cst_21 : f32 to vector<8x128xf32>
    %84 = arith.addf %83, %82 : vector<8x128xf32>
    %85 = arith.divf %83, %84 : vector<8x128xf32>
    %86 = arith.select %9, %80, %85 : vector<8x128xi1>, vector<8x128xf32>
    %87 = vector.extract_strided_slice %86 {offsets = [0, 0], sizes = [8, 32], strides = [1, 1]} : vector<8x128xf32> to vector<8x32xf32>
    %88 = vector.extract_strided_slice %86 {offsets = [0, 32], sizes = [8, 32], strides = [1, 1]} : vector<8x128xf32> to vector<8x32xf32>
    %89 = vector.extract_strided_slice %86 {offsets = [0, 64], sizes = [8, 32], strides = [1, 1]} : vector<8x128xf32> to vector<8x32xf32>
    %90 = vector.extract_strided_slice %86 {offsets = [0, 96], sizes = [8, 32], strides = [1, 1]} : vector<8x128xf32> to vector<8x32xf32>
    %91 = arith.mulf %88, %72 : vector<8x32xf32>
    %92 = arith.mulf %87, %89 : vector<8x32xf32>
    %93 = arith.addf %91, %92 : vector<8x32xf32>
    %94 = math.tanh %93 : vector<8x32xf32>
    %95 = arith.mulf %90, %94 : vector<8x32xf32>
    %c4_i32 = arith.constant 4 : i32
    %96 = arith.index_cast %c4_i32 : i32 to index
    %c0_22 = arith.constant 0 : index
    %c0_23 = arith.constant 0 : index
    %97 = vector.load %arg2[%96, %c0_22, %c0_23] : memref<8x8x128xf32, #tpu.memory_space<vmem>>, vector<1x8x128xf32>
    %98 = vector.shape_cast %97 : vector<1x8x128xf32> to vector<8x128xf32>
    %cst_24 = arith.constant dense<0.000000e+00> : vector<8x128xf32>
    %99 = tpu.matmul %95, %3, %cst_24 {dimension_numbers = #tpu.dot_dimension_numbers<[1], [0], [0], [1], [0, 0, 1, 1], [], []>} : vector<8x32xf32>, vector<32x128xf32>, vector<8x128xf32> -> vector<8x128xf32>
    %100 = arith.addf %98, %99 : vector<8x128xf32>
    %101 = math.tanh %100 : vector<8x128xf32>
    %102 = arith.negf %100 : vector<8x128xf32>
    %103 = math.exp %102 : vector<8x128xf32>
    %cst_25 = arith.constant 1.000000e+00 : f32
    %104 = vector.broadcast %cst_25 : f32 to vector<8x128xf32>
    %105 = arith.addf %104, %103 : vector<8x128xf32>
    %106 = arith.divf %104, %105 : vector<8x128xf32>
    %107 = arith.select %9, %101, %106 : vector<8x128xi1>, vector<8x128xf32>
    %108 = vector.extract_strided_slice %107 {offsets = [0, 0], sizes = [8, 32], strides = [1, 1]} : vector<8x128xf32> to vector<8x32xf32>
    %109 = vector.extract_strided_slice %107 {offsets = [0, 32], sizes = [8, 32], strides = [1, 1]} : vector<8x128xf32> to vector<8x32xf32>
    %110 = vector.extract_strided_slice %107 {offsets = [0, 64], sizes = [8, 32], strides = [1, 1]} : vector<8x128xf32> to vector<8x32xf32>
    %111 = vector.extract_strided_slice %107 {offsets = [0, 96], sizes = [8, 32], strides = [1, 1]} : vector<8x128xf32> to vector<8x32xf32>
    %112 = arith.mulf %109, %93 : vector<8x32xf32>
    %113 = arith.mulf %108, %110 : vector<8x32xf32>
    %114 = arith.addf %112, %113 : vector<8x32xf32>
    %115 = math.tanh %114 : vector<8x32xf32>
    %116 = arith.mulf %111, %115 : vector<8x32xf32>
    %c5_i32 = arith.constant 5 : i32
    %117 = arith.index_cast %c5_i32 : i32 to index
    %c0_26 = arith.constant 0 : index
    %c0_27 = arith.constant 0 : index
    %118 = vector.load %arg2[%117, %c0_26, %c0_27] : memref<8x8x128xf32, #tpu.memory_space<vmem>>, vector<1x8x128xf32>
    %119 = vector.shape_cast %118 : vector<1x8x128xf32> to vector<8x128xf32>
    %cst_28 = arith.constant dense<0.000000e+00> : vector<8x128xf32>
    %120 = tpu.matmul %116, %3, %cst_28 {dimension_numbers = #tpu.dot_dimension_numbers<[1], [0], [0], [1], [0, 0, 1, 1], [], []>} : vector<8x32xf32>, vector<32x128xf32>, vector<8x128xf32> -> vector<8x128xf32>
    %121 = arith.addf %119, %120 : vector<8x128xf32>
    %122 = math.tanh %121 : vector<8x128xf32>
    %123 = arith.negf %121 : vector<8x128xf32>
    %124 = math.exp %123 : vector<8x128xf32>
    %cst_29 = arith.constant 1.000000e+00 : f32
    %125 = vector.broadcast %cst_29 : f32 to vector<8x128xf32>
    %126 = arith.addf %125, %124 : vector<8x128xf32>
    %127 = arith.divf %125, %126 : vector<8x128xf32>
    %128 = arith.select %9, %122, %127 : vector<8x128xi1>, vector<8x128xf32>
    %129 = vector.extract_strided_slice %128 {offsets = [0, 0], sizes = [8, 32], strides = [1, 1]} : vector<8x128xf32> to vector<8x32xf32>
    %130 = vector.extract_strided_slice %128 {offsets = [0, 32], sizes = [8, 32], strides = [1, 1]} : vector<8x128xf32> to vector<8x32xf32>
    %131 = vector.extract_strided_slice %128 {offsets = [0, 64], sizes = [8, 32], strides = [1, 1]} : vector<8x128xf32> to vector<8x32xf32>
    %132 = vector.extract_strided_slice %128 {offsets = [0, 96], sizes = [8, 32], strides = [1, 1]} : vector<8x128xf32> to vector<8x32xf32>
    %133 = arith.mulf %130, %114 : vector<8x32xf32>
    %134 = arith.mulf %129, %131 : vector<8x32xf32>
    %135 = arith.addf %133, %134 : vector<8x32xf32>
    %136 = math.tanh %135 : vector<8x32xf32>
    %137 = arith.mulf %132, %136 : vector<8x32xf32>
    %c6_i32 = arith.constant 6 : i32
    %138 = arith.index_cast %c6_i32 : i32 to index
    %c0_30 = arith.constant 0 : index
    %c0_31 = arith.constant 0 : index
    %139 = vector.load %arg2[%138, %c0_30, %c0_31] : memref<8x8x128xf32, #tpu.memory_space<vmem>>, vector<1x8x128xf32>
    %140 = vector.shape_cast %139 : vector<1x8x128xf32> to vector<8x128xf32>
    %cst_32 = arith.constant dense<0.000000e+00> : vector<8x128xf32>
    %141 = tpu.matmul %137, %3, %cst_32 {dimension_numbers = #tpu.dot_dimension_numbers<[1], [0], [0], [1], [0, 0, 1, 1], [], []>} : vector<8x32xf32>, vector<32x128xf32>, vector<8x128xf32> -> vector<8x128xf32>
    %142 = arith.addf %140, %141 : vector<8x128xf32>
    %143 = math.tanh %142 : vector<8x128xf32>
    %144 = arith.negf %142 : vector<8x128xf32>
    %145 = math.exp %144 : vector<8x128xf32>
    %cst_33 = arith.constant 1.000000e+00 : f32
    %146 = vector.broadcast %cst_33 : f32 to vector<8x128xf32>
    %147 = arith.addf %146, %145 : vector<8x128xf32>
    %148 = arith.divf %146, %147 : vector<8x128xf32>
    %149 = arith.select %9, %143, %148 : vector<8x128xi1>, vector<8x128xf32>
    %150 = vector.extract_strided_slice %149 {offsets = [0, 0], sizes = [8, 32], strides = [1, 1]} : vector<8x128xf32> to vector<8x32xf32>
    %151 = vector.extract_strided_slice %149 {offsets = [0, 32], sizes = [8, 32], strides = [1, 1]} : vector<8x128xf32> to vector<8x32xf32>
    %152 = vector.extract_strided_slice %149 {offsets = [0, 64], sizes = [8, 32], strides = [1, 1]} : vector<8x128xf32> to vector<8x32xf32>
    %153 = vector.extract_strided_slice %149 {offsets = [0, 96], sizes = [8, 32], strides = [1, 1]} : vector<8x128xf32> to vector<8x32xf32>
    %154 = arith.mulf %151, %135 : vector<8x32xf32>
    %155 = arith.mulf %150, %152 : vector<8x32xf32>
    %156 = arith.addf %154, %155 : vector<8x32xf32>
    %157 = math.tanh %156 : vector<8x32xf32>
    %158 = arith.mulf %153, %157 : vector<8x32xf32>
    %c7_i32 = arith.constant 7 : i32
    %159 = arith.index_cast %c7_i32 : i32 to index
    %c0_34 = arith.constant 0 : index
    %c0_35 = arith.constant 0 : index
    %160 = vector.load %arg2[%159, %c0_34, %c0_35] : memref<8x8x128xf32, #tpu.memory_space<vmem>>, vector<1x8x128xf32>
    %161 = vector.shape_cast %160 : vector<1x8x128xf32> to vector<8x128xf32>
    %cst_36 = arith.constant dense<0.000000e+00> : vector<8x128xf32>
    %162 = tpu.matmul %158, %3, %cst_36 {dimension_numbers = #tpu.dot_dimension_numbers<[1], [0], [0], [1], [0, 0, 1, 1], [], []>} : vector<8x32xf32>, vector<32x128xf32>, vector<8x128xf32> -> vector<8x128xf32>
    %163 = arith.addf %161, %162 : vector<8x128xf32>
    %164 = math.tanh %163 : vector<8x128xf32>
    %165 = arith.negf %163 : vector<8x128xf32>
    %166 = math.exp %165 : vector<8x128xf32>
    %cst_37 = arith.constant 1.000000e+00 : f32
    %167 = vector.broadcast %cst_37 : f32 to vector<8x128xf32>
    %168 = arith.addf %167, %166 : vector<8x128xf32>
    %169 = arith.divf %167, %168 : vector<8x128xf32>
    %170 = arith.select %9, %164, %169 : vector<8x128xi1>, vector<8x128xf32>
    %171 = vector.extract_strided_slice %170 {offsets = [0, 0], sizes = [8, 32], strides = [1, 1]} : vector<8x128xf32> to vector<8x32xf32>
    %172 = vector.extract_strided_slice %170 {offsets = [0, 32], sizes = [8, 32], strides = [1, 1]} : vector<8x128xf32> to vector<8x32xf32>
    %173 = vector.extract_strided_slice %170 {offsets = [0, 64], sizes = [8, 32], strides = [1, 1]} : vector<8x128xf32> to vector<8x32xf32>
    %174 = vector.extract_strided_slice %170 {offsets = [0, 96], sizes = [8, 32], strides = [1, 1]} : vector<8x128xf32> to vector<8x32xf32>
    %175 = arith.mulf %172, %156 : vector<8x32xf32>
    %176 = arith.mulf %171, %173 : vector<8x32xf32>
    %177 = arith.addf %175, %176 : vector<8x32xf32>
    %178 = math.tanh %177 : vector<8x32xf32>
    %179 = arith.mulf %174, %178 : vector<8x32xf32>
    %c8_i32 = arith.constant 8 : i32
    %c0_38 = arith.constant 0 : index
    %c0_39 = arith.constant 0 : index
    %180 = vector.load %arg7[%c0_38, %c0_39] : memref<8x32xf32, #tpu.memory_space<vmem>>, vector<8x32xf32>
    tpu.vector_store %arg7[%c0_38, %c0_39], %179 {strides = array<i32>} : memref<8x32xf32, #tpu.memory_space<vmem>>, vector<8x32xf32>,
    %c0_40 = arith.constant 0 : index
    %c0_41 = arith.constant 0 : index
    %181 = vector.load %arg8[%c0_40, %c0_41] : memref<8x32xf32, #tpu.memory_space<vmem>>, vector<8x32xf32>
    tpu.vector_store %arg8[%c0_40, %c0_41], %177 {strides = array<i32>} : memref<8x32xf32, #tpu.memory_space<vmem>>, vector<8x32xf32>,
    %c0_i32_42 = arith.constant 0 : i32
    %182 = arith.cmpi eq, %arg1, %c0_i32_42 : i32
    %183 = arith.extui %182 : i1 to i32
    %c0_i32_43 = arith.constant 0 : i32
    %184 = arith.cmpi ne, %183, %c0_i32_43 : i32
    scf.if %184 {
      %c0_44 = arith.constant 0 : index
      %c0_45 = arith.constant 0 : index
      %185 = vector.load %arg4[%c0_44, %c0_45] : memref<32x128xf32, #tpu.memory_space<vmem>>, vector<32x128xf32>
      %c0_46 = arith.constant 0 : index
      %c0_47 = arith.constant 0 : index
      %186 = vector.load %arg7[%c0_46, %c0_47] : memref<8x32xf32, #tpu.memory_space<vmem>>, vector<8x32xf32>
      %cst_48 = arith.constant dense<0.000000e+00> : vector<8x128xf32>
      %187 = tpu.matmul %186, %185, %cst_48 {dimension_numbers = #tpu.dot_dimension_numbers<[1], [0], [0], [1], [0, 0, 1, 1], [], []>} : vector<8x32xf32>, vector<32x128xf32>, vector<8x128xf32> -> vector<8x128xf32>
      %c0_49 = arith.constant 0 : index
      %c0_50 = arith.constant 0 : index
      %188 = vector.load %arg5[%c0_49, %c0_50] : memref<1x128xf32, #tpu.memory_space<vmem>>, vector<1x128xf32>
      %189 = vector.broadcast %188 : vector<1x128xf32> to vector<8x128xf32>
      %190 = arith.addf %187, %189 : vector<8x128xf32>
      %c0_51 = arith.constant 0 : index
      %c0_52 = arith.constant 0 : index
      %191 = vector.load %arg6[%c0_51, %c0_52] : memref<8x128xf32, #tpu.memory_space<vmem>>, vector<8x128xf32>
      tpu.vector_store %arg6[%c0_51, %c0_52], %190 {strides = array<i32>} : memref<8x128xf32, #tpu.memory_space<vmem>>, vector<8x128xf32>,
    } else {
    }
    return
  }
  func.func @transform_0(%arg0: i32, %arg1: i32) -> (i32, i32, i32) {
    %c0_i32 = arith.constant 0 : i32
    %c0_i32_0 = arith.constant 0 : i32
    return %arg1, %arg0, %c0_i32 : i32, i32, i32
  }
  func.func @transform_1(%arg0: i32, %arg1: i32) -> (i32, i32) {
    %c0_i32 = arith.constant 0 : i32
    %c0_i32_0 = arith.constant 0 : i32
    %c0_i32_1 = arith.constant 0 : i32
    return %c0_i32, %c0_i32_0 : i32, i32
  }
  func.func @transform_2(%arg0: i32, %arg1: i32) -> (i32, i32) {
    %c0_i32 = arith.constant 0 : i32
    %c0_i32_0 = arith.constant 0 : i32
    %c0_i32_1 = arith.constant 0 : i32
    return %c0_i32, %c0_i32_0 : i32, i32
  }
  func.func @transform_3(%arg0: i32, %arg1: i32) -> (i32, i32) {
    %c0_i32 = arith.constant 0 : i32
    %c0_i32_0 = arith.constant 0 : i32
    %c0_i32_1 = arith.constant 0 : i32
    return %c0_i32, %c0_i32_0 : i32, i32
  }
  func.func @transform_4(%arg0: i32, %arg1: i32) -> (i32, i32) {
    %c0_i32 = arith.constant 0 : i32
    %c0_i32_0 = arith.constant 0 : i32
    return %arg0, %c0_i32 : i32, i32
  }
}

</mosaic_0001>

<llo_original>
// kernel: tpu_custom_call.1
$region0: #{tpu_custom_call.1}
  #allocation0 [shape = 'u32[]', space=smem, size = 0x4, offset = 0x4, fixed_abs, tag = 'smem constant byte address 0x4 - core index']
  #allocation1 [shape = 'u32[72,128]{1,0:T(1,128)}', space=vmem, size = 0x9000, scoped, tag = 'internal scratch']
  #allocation2 [shape = 'f32[8,32]{1,0:T(8,128)}', space=vmem, size = 0x1000, scoped, tag = 'scratch operand']
  #allocation3 [shape = 'f32[8,32]{1,0:T(8,128)}', space=vmem, size = 0x1000, scoped, tag = 'scratch operand']
  %s0 = inlined_call_operand.hbm [shape: f32[8,8,128], index: 0, kind: input, shape index: {}]
  %s1 = inlined_call_operand.hbm [shape: f32[32,128], index: 1, kind: input, shape index: {}]
  %s2 = inlined_call_operand.hbm [shape: f32[32,128], index: 2, kind: input, shape index: {}]
  %s3 = inlined_call_operand.vmem [shape: f32[1,128], index: 3, kind: input, shape index: {}]
  %s4 = inlined_call_operand.hbm [shape: f32[8,128], index: 4, kind: output, shape index: {}]
  %s5 = sld [smem:[#allocation0]]
  $region46: #{tpu_custom_call.1} parent=0
    _
  %s7 = ssub.s32 1, %s5
  %s8 = scalar_select 0, %s7, %s5
  $region1: #{tpu_custom_call.1} parent=0
    #allocation4 [shape = 'u8[32768]{0}', space=vmem, size = 0x8000, scoped, tag = 'input window, operand 0, single buffered']
    #allocation5 [shape = 's32[1]{0}', space=sflag, size = 0x4, scoped, tag = 'scoped memory for tpu_custom_call.1']
    #allocation6 [shape = 's32[1]{0}', space=sflag, size = 0x4, scoped, tag = 'scoped memory for tpu_custom_call.1']
    #allocation7 [shape = 'u8[16384]{0}', space=vmem, size = 0x4000, scoped, tag = 'input window, operand 1, single buffered']
    #allocation8 [shape = 's32[1]{0}', space=sflag, size = 0x4, scoped, tag = 'scoped memory for tpu_custom_call.1']
    #allocation9 [shape = 'u8[16384]{0}', space=vmem, size = 0x4000, scoped, tag = 'input window, operand 2, single buffered']
    #allocation10 [shape = 'u8[4096]{0}', space=vmem, size = 0x1000, scoped, tag = 'output window, operand 0, single buffered']
    %9 = vsyncpa [#allocation5], 0
    %10 = vsyncpa [#allocation8], 0
    %11 = vsyncpa [#allocation6], 0
    // Predicated region
    $region2: #{tpu_custom_call.1} parent=1 // pred_check
      _
    $region3: #{tpu_custom_call.1} parent=1 // pred_check_branch
      %13 = sbr.rel (0) target = $region5
    $region4: #{tpu_custom_call.1} parent=1 // pred_region
      %15 = vsyncadd [#allocation5], 0
      %s16 = sshll.u32 %s0, 4
      %s17 = int_to_ptr.hbm [resolvable:$true] %s16
      %s18 = sshll.u32 [#allocation4], 4
      %s19 = int_to_ptr.vmem [resolvable:$true] %s18
      %24 = dma.hbm_to_vmem [thread:$0]  %s17, 1024, %s19, [#allocation5], 128, 128, 8
    $region5: #{tpu_custom_call.1} parent=1 // pred_fallthru
      _
    // Predicated region
    $region6: #{tpu_custom_call.1} parent=1 // pred_check
      _
    $region7: #{tpu_custom_call.1} parent=1 // pred_check_branch
      %26 = sbr.rel (0) target = $region9
    $region8: #{tpu_custom_call.1} parent=1 // pred_region
      %28 = vsyncadd [#allocation8], 0
      %s29 = sshll.u32 %s1, 4
      %s30 = int_to_ptr.hbm [resolvable:$true] %s29
      %s31 = sshll.u32 [#allocation7], 4
      %s32 = int_to_ptr.vmem [resolvable:$true] %s31
      %37 = dma.hbm_to_vmem [thread:$0]  %s30, 512, %s32, [#allocation8], 128, 128, 8
    $region9: #{tpu_custom_call.1} parent=1 // pred_fallthru
      _
    // Predicated region
    $region10: #{tpu_custom_call.1} parent=1 // pred_check
      _
    $region11: #{tpu_custom_call.1} parent=1 // pred_check_branch
      %39 = sbr.rel (0) target = $region13
    $region12: #{tpu_custom_call.1} parent=1 // pred_region
      %41 = vsyncadd [#allocation8], 0
      %s42 = sshll.u32 %s2, 4
      %s43 = int_to_ptr.hbm [resolvable:$true] %s42
      %s44 = sshll.u32 [#allocation9], 4
      %s45 = int_to_ptr.vmem [resolvable:$true] %s44
      %50 = dma.hbm_to_vmem [thread:$0]  %s43, 512, %s45, [#allocation8], 128, 128, 8
    $region13: #{tpu_custom_call.1} parent=1 // pred_fallthru
      _
    // Predicated region
    $region14: #{tpu_custom_call.1} parent=1 // pred_check
      _
    $region15: #{tpu_custom_call.1} parent=1 // pred_check_branch
      %52 = sbr.rel (0) target = $region17
    $region16: #{tpu_custom_call.1} parent=1 // pred_region
      _
    $region17: #{tpu_custom_call.1} parent=1 // pred_fallthru
      _
    // Predicated region
    $region18: #{tpu_custom_call.1} parent=1 // pred_check
      _
    $region19: #{tpu_custom_call.1} parent=1 // pred_check_branch
      %54 = sbr.rel (0) target = $region21
    $region20: #{tpu_custom_call.1} parent=1 // pred_region
      %56 = dma.done [#allocation5], 1024
    $region21: #{tpu_custom_call.1} parent=1 // pred_fallthru
      _
    // Predicated region
    $region22: #{tpu_custom_call.1} parent=1 // pred_check
      _
    $region23: #{tpu_custom_call.1} parent=1 // pred_check_branch
      %58 = sbr.rel (0) target = $region25
    $region24: #{tpu_custom_call.1} parent=1 // pred_region
      %60 = dma.done [#allocation8], 512
    $region25: #{tpu_custom_call.1} parent=1 // pred_fallthru
      _
    // Predicated region
    $region26: #{tpu_custom_call.1} parent=1 // pred_check
      _
    $region27: #{tpu_custom_call.1} parent=1 // pred_check_branch
      %62 = sbr.rel (0) target = $region29
    $region28: #{tpu_custom_call.1} parent=1 // pred_region
      %64 = dma.done [#allocation8], 512
    $region29: #{tpu_custom_call.1} parent=1 // pred_fallthru
      _
    %p65 = scmp.eq.s32.totalorder 0, 0
    // Predicated region
    $region30: #{tpu_custom_call.1} parent=1 // pred_check
      %p66 = pneg %p65
    $region31: #{tpu_custom_call.1} parent=1 // pred_check_branch
      %68 = sbr.rel (%p66) target = $region33
    $region32: #{tpu_custom_call.1} parent=1 // pred_region
      %vm69 = vcmask 261120
      %70 = vst.msk [vmem:[#allocation2] sm:$0xff] %vm69, 0.0
      %71 = vst.msk [vmem:[#allocation3] sm:$0xff] %vm69, 0.0
    $region33: #{tpu_custom_call.1} parent=1 // pred_fallthru
      _
    %v72 = vld [vmem:[#allocation7] sm:$0xff]
    %v73 = vld [vmem:[#allocation7 + $0x8] sm:$0xff]
    %v74 = vld [vmem:[#allocation7 + $0x10] sm:$0xff]
    %v75 = vld [vmem:[#allocation7 + $0x18] sm:$0xff]
    %v76 = vlaneseq
    %v77 = vand.u32 %v76, 127
    %vm78 = vcmp.ge.s32.totalorder %v77, 64
    %vm79 = vcmp.lt.s32.totalorder %v77, 96
    %vm80 = vmand %vm78, %vm79
    %v81 = vld [vmem:[#allocation2] sm:$0xff]
    %v82 = vld [vmem:[#allocation3] sm:$0xff]
    %v83 = vld [vmem:[#allocation4] sm:$0xff]
    %vm84 = vcmask 261120
    %v86 = vsel %vm84, %v81, 0
    %88 = vmatpush.msra.mxu0 0.0
    %89 = vmatpush.msra.mxu0 0.0
    %90 = vmatpush.msra.mxu0 0.0
    %91 = vmatpush.msra.mxu0 0.0
    %92 = vmatpush.msra.mxu0 0.0
    %93 = vmatpush.msra.mxu0 0.0
    %94 = vmatpush.msra.mxu0 0.0
    %95 = vmatpush.msra.mxu0 0.0
    %96 = vmatpush.msra.mxu0 0.0
    %97 = vmatpush.msra.mxu0 0.0
    %98 = vmatpush.msra.mxu0 0.0
    %99 = vmatpush.msra.mxu0 0.0
    %100 = vmatpush.msra.mxu0 %v75
    %101 = vmatpush.msra.mxu0 %v74
    %102 = vmatpush.msra.mxu0 %v73
    %103 = vmatpush.msra.mxu0 %v72
    %104 = vmatmul.f32.gmra.mxu0 %v86
    %v105 = vpop.f32.mrf.mxu0
    %v106 = vadd.f32 0.0, %v105
    %107 = vdwg.mxu0
    %v108 = vadd.f32 %v83, %v106
    %v109 = vtanh.pop %v108
    %v110 = vxor.u32 %v108, 2147483648
    %v111 = vmul.f32 %v110, 1.442695
    %v112 = vpow.pop %v111
    %v113 = vadd.f32 %v112, 1.0
    %v114 = vrcp.pop %v113
    %v115 = vmul.f32 %v113, %v114
    %v116 = vsub.f32 1.0, %v115
    %v117 = vmul.f32 %v114, %v116
    %v118 = vadd.f32 %v114, %v117
    %vm119 = vweird.f32 %v113
    %vm120 = vweird.f32 %v114
    %vm121 = vmor %vm119, %vm120
    %v122 = vsel %vm121, %v114, %v118
    %v123 = vand.u32 2147483647, %v113
    %vm124 = vcmp.eq.f32.partialorder %v123, 8.507059e+37
    %v125 = vand.u32 %v113, 2147483648
    %v126 = vor.u32 1.1754944e-38, %v125
    %v127 = vsel %vm124, %v126, %v122
    %v128 = vmul.f32 1.0, %v127
    %v129 = vsel %vm80, %v109, %v128
    %131 = vrot.lane.b32.xlu0 %v82, 32
    %v132 = vpop.permute.xlu0 %131
    %v134 = vmul.f32 %v129, %v132
    %136 = vrot.lane.b32.xlu0 %v129, 64
    %v137 = vpop.permute.xlu0 %136
    %v139 = vmul.f32 %v129, %v137
    %141 = vrot.lane.b32.xlu0 %v139, 32
    %v142 = vpop.permute.xlu0 %141
    %v144 = vadd.f32 %v134, %v142
    %v145 = vtanh.pop %v144
    %147 = vrot.lane.b32.xlu0 %v145, 64
    %v148 = vpop.permute.xlu0 %147
    %v150 = vmul.f32 %v129, %v148
    %s151 = scalar_lea.vmem [#allocation4], 8
    %v152 = vld [vmem:[%s151] sm:$0xff]
    %154 = vrot.lane.b32.xlu0 %v150, 32
    %v155 = vpop.permute.xlu0 %154
    %v156 = vsel %vm84, %v155, 0
    %158 = vmatpush.msra.mxu0 0.0
    %159 = vmatpush.msra.mxu0 0.0
    %160 = vmatpush.msra.mxu0 0.0
    %161 = vmatpush.msra.mxu0 0.0
    %162 = vmatpush.msra.mxu0 0.0
    %163 = vmatpush.msra.mxu0 0.0
    %164 = vmatpush.msra.mxu0 0.0
    %165 = vmatpush.msra.mxu0 0.0
    %166 = vmatpush.msra.mxu0 0.0
    %167 = vmatpush.msra.mxu0 0.0
    %168 = vmatpush.msra.mxu0 0.0
    %169 = vmatpush.msra.mxu0 0.0
    %170 = vmatpush.msra.mxu0 %v75
    %171 = vmatpush.msra.mxu0 %v74
    %172 = vmatpush.msra.mxu0 %v73
    %173 = vmatpush.msra.mxu0 %v72
    %174 = vmatmul.f32.gmra.mxu0 %v156
    %v175 = vpop.f32.mrf.mxu0
    %v176 = vadd.f32 0.0, %v175
    %177 = vdwg.mxu0
    %v178 = vadd.f32 %v152, %v176
    %v179 = vtanh.pop %v178
    %v180 = vxor.u32 %v178, 2147483648
    %v181 = vmul.f32 %v180, 1.442695
    %v182 = vpow.pop %v181
    %v183 = vadd.f32 %v182, 1.0
    %v184 = vrcp.pop %v183
    %v185 = vmul.f32 %v183, %v184
    %v186 = vsub.f32 1.0, %v185
    %v187 = vmul.f32 %v184, %v186
    %v188 = vadd.f32 %v184, %v187
    %vm189 = vweird.f32 %v183
    %vm190 = vweird.f32 %v184
    %vm191 = vmor %vm189, %vm190
    %v192 = vsel %vm191, %v184, %v188
    %v193 = vand.u32 2147483647, %v183
    %vm194 = vcmp.eq.f32.partialorder %v193, 8.507059e+37
    %v195 = vand.u32 %v183, 2147483648
    %v196 = vor.u32 1.1754944e-38, %v195
    %v197 = vsel %vm194, %v196, %v192
    %v198 = vmul.f32 1.0, %v197
    %v199 = vsel %vm80, %v179, %v198
    %v200 = vmul.f32 %v199, %v144
    %202 = vrot.lane.b32.xlu0 %v199, 64
    %v203 = vpop.permute.xlu0 %202
    %v205 = vmul.f32 %v199, %v203
    %207 = vrot.lane.b32.xlu0 %v205, 32
    %v208 = vpop.permute.xlu0 %207
    %v210 = vadd.f32 %v200, %v208
    %v211 = vtanh.pop %v210
    %213 = vrot.lane.b32.xlu0 %v211, 64
    %v214 = vpop.permute.xlu0 %213
    %v216 = vmul.f32 %v199, %v214
    %s217 = scalar_lea.vmem [#allocation4], 16
    %v218 = vld [vmem:[%s217] sm:$0xff]
    %220 = vrot.lane.b32.xlu0 %v216, 32
    %v221 = vpop.permute.xlu0 %220
    %v222 = vsel %vm84, %v221, 0
    %224 = vmatpush.msra.mxu0 0.0
    %225 = vmatpush.msra.mxu0 0.0
    %226 = vmatpush.msra.mxu0 0.0
    %227 = vmatpush.msra.mxu0 0.0
    %228 = vmatpush.msra.mxu0 0.0
    %229 = vmatpush.msra.mxu0 0.0
    %230 = vmatpush.msra.mxu0 0.0
    %231 = vmatpush.msra.mxu0 0.0
    %232 = vmatpush.msra.mxu0 0.0
    %233 = vmatpush.msra.mxu0 0.0
    %234 = vmatpush.msra.mxu0 0.0
    %235 = vmatpush.msra.mxu0 0.0
    %236 = vmatpush.msra.mxu0 %v75
    %237 = vmatpush.msra.mxu0 %v74
    %238 = vmatpush.msra.mxu0 %v73
    %239 = vmatpush.msra.mxu0 %v72
    %240 = vmatmul.f32.gmra.mxu0 %v222
    %v241 = vpop.f32.mrf.mxu0
    %v242 = vadd.f32 0.0, %v241
    %243 = vdwg.mxu0
    %v244 = vadd.f32 %v218, %v242
    %v245 = vtanh.pop %v244
    %v246 = vxor.u32 %v244, 2147483648
    %v247 = vmul.f32 %v246, 1.442695
    %v248 = vpow.pop %v247
    %v249 = vadd.f32 %v248, 1.0
    %v250 = vrcp.pop %v249
    %v251 = vmul.f32 %v249, %v250
    %v252 = vsub.f32 1.0, %v251
    %v253 = vmul.f32 %v250, %v252
    %v254 = vadd.f32 %v250, %v253
    %vm255 = vweird.f32 %v249
    %vm256 = vweird.f32 %v250
    %vm257 = vmor %vm255, %vm256
    %v258 = vsel %vm257, %v250, %v254
    %v259 = vand.u32 2147483647, %v249
    %vm260 = vcmp.eq.f32.partialorder %v259, 8.507059e+37
    %v261 = vand.u32 %v249, 2147483648
    %v262 = vor.u32 1.1754944e-38, %v261
    %v263 = vsel %vm260, %v262, %v258
    %v264 = vmul.f32 1.0, %v263
    %v265 = vsel %vm80, %v245, %v264
    %v266 = vmul.f32 %v265, %v210
    %268 = vrot.lane.b32.xlu0 %v265, 64
    %v269 = vpop.permute.xlu0 %268
    %v271 = vmul.f32 %v265, %v269
    %273 = vrot.lane.b32.xlu0 %v271, 32
    %v274 = vpop.permute.xlu0 %273
    %v276 = vadd.f32 %v266, %v274
    %v277 = vtanh.pop %v276
    %279 = vrot.lane.b32.xlu0 %v277, 64
    %v280 = vpop.permute.xlu0 %279
    %v282 = vmul.f32 %v265, %v280
    %s283 = scalar_lea.vmem [#allocation4], 24
    %v284 = vld [vmem:[%s283] sm:$0xff]
    %286 = vrot.lane.b32.xlu0 %v282, 32
    %v287 = vpop.permute.xlu0 %286
    %v288 = vsel %vm84, %v287, 0
    %290 = vmatpush.msra.mxu0 0.0
    %291 = vmatpush.msra.mxu0 0.0
    %292 = vmatpush.msra.mxu0 0.0
    %293 = vmatpush.msra.mxu0 0.0
    %294 = vmatpush.msra.mxu0 0.0
    %295 = vmatpush.msra.mxu0 0.0
    %296 = vmatpush.msra.mxu0 0.0
    %297 = vmatpush.msra.mxu0 0.0
    %298 = vmatpush.msra.mxu0 0.0
    %299 = vmatpush.msra.mxu0 0.0
    %300 = vmatpush.msra.mxu0 0.0
    %301 = vmatpush.msra.mxu0 0.0
    %302 = vmatpush.msra.mxu0 %v75
    %303 = vmatpush.msra.mxu0 %v74
    %304 = vmatpush.msra.mxu0 %v73
    %305 = vmatpush.msra.mxu0 %v72
    %306 = vmatmul.f32.gmra.mxu0 %v288
    %v307 = vpop.f32.mrf.mxu0
    %v308 = vadd.f32 0.0, %v307
    %309 = vdwg.mxu0
    %v310 = vadd.f32 %v284, %v308
    %v311 = vtanh.pop %v310
    %v312 = vxor.u32 %v310, 2147483648
    %v313 = vmul.f32 %v312, 1.442695
    %v314 = vpow.pop %v313
    %v315 = vadd.f32 %v314, 1.0
    %v316 = vrcp.pop %v315
    %v317 = vmul.f32 %v315, %v316
    %v318 = vsub.f32 1.0, %v317
    %v319 = vmul.f32 %v316, %v318
    %v320 = vadd.f32 %v316, %v319
    %vm321 = vweird.f32 %v315
    %vm322 = vweird.f32 %v316
    %vm323 = vmor %vm321, %vm322
    %v324 = vsel %vm323, %v316, %v320
    %v325 = vand.u32 2147483647, %v315
    %vm326 = vcmp.eq.f32.partialorder %v325, 8.507059e+37
    %v327 = vand.u32 %v315, 2147483648
    %v328 = vor.u32 1.1754944e-38, %v327
    %v329 = vsel %vm326, %v328, %v324
    %v330 = vmul.f32 1.0, %v329
    %v331 = vsel %vm80, %v311, %v330
    %v332 = vmul.f32 %v331, %v276
    %334 = vrot.lane.b32.xlu0 %v331, 64
    %v335 = vpop.permute.xlu0 %334
    %v337 = vmul.f32 %v331, %v335
    %339 = vrot.lane.b32.xlu0 %v337, 32
    %v340 = vpop.permute.xlu0 %339
    %v342 = vadd.f32 %v332, %v340
    %v343 = vtanh.pop %v342
    %345 = vrot.lane.b32.xlu0 %v343, 64
    %v346 = vpop.permute.xlu0 %345
    %v348 = vmul.f32 %v331, %v346
    %s349 = scalar_lea.vmem [#allocation4], 32
    %v350 = vld [vmem:[%s349] sm:$0xff]
    %352 = vrot.lane.b32.xlu0 %v348, 32
    %v353 = vpop.permute.xlu0 %352
    %v354 = vsel %vm84, %v353, 0
    %356 = vmatpush.msra.mxu0 0.0
    %357 = vmatpush.msra.mxu0 0.0
    %358 = vmatpush.msra.mxu0 0.0
    %359 = vmatpush.msra.mxu0 0.0
    %360 = vmatpush.msra.mxu0 0.0
    %361 = vmatpush.msra.mxu0 0.0
    %362 = vmatpush.msra.mxu0 0.0
    %363 = vmatpush.msra.mxu0 0.0
    %364 = vmatpush.msra.mxu0 0.0
    %365 = vmatpush.msra.mxu0 0.0
    %366 = vmatpush.msra.mxu0 0.0
    %367 = vmatpush.msra.mxu0 0.0
    %368 = vmatpush.msra.mxu0 %v75
    %369 = vmatpush.msra.mxu0 %v74
    %370 = vmatpush.msra.mxu0 %v73
    %371 = vmatpush.msra.mxu0 %v72
    %372 = vmatmul.f32.gmra.mxu0 %v354
    %v373 = vpop.f32.mrf.mxu0
    %v374 = vadd.f32 0.0, %v373
    %375 = vdwg.mxu0
    %v376 = vadd.f32 %v350, %v374
    %v377 = vtanh.pop %v376
    %v378 = vxor.u32 %v376, 2147483648
    %v379 = vmul.f32 %v378, 1.442695
    %v380 = vpow.pop %v379
    %v381 = vadd.f32 %v380, 1.0
    %v382 = vrcp.pop %v381
    %v383 = vmul.f32 %v381, %v382
    %v384 = vsub.f32 1.0, %v383
    %v385 = vmul.f32 %v382, %v384
    %v386 = vadd.f32 %v382, %v385
    %vm387 = vweird.f32 %v381
    %vm388 = vweird.f32 %v382
    %vm389 = vmor %vm387, %vm388
    %v390 = vsel %vm389, %v382, %v386
    %v391 = vand.u32 2147483647, %v381
    %vm392 = vcmp.eq.f32.partialorder %v391, 8.507059e+37
    %v393 = vand.u32 %v381, 2147483648
    %v394 = vor.u32 1.1754944e-38, %v393
    %v395 = vsel %vm392, %v394, %v390
    %v396 = vmul.f32 1.0, %v395
    %v397 = vsel %vm80, %v377, %v396
    %v398 = vmul.f32 %v397, %v342
    %400 = vrot.lane.b32.xlu0 %v397, 64
    %v401 = vpop.permute.xlu0 %400
    %v403 = vmul.f32 %v397, %v401
    %405 = vrot.lane.b32.xlu0 %v403, 32
    %v406 = vpop.permute.xlu0 %405
    %v408 = vadd.f32 %v398, %v406
    %v409 = vtanh.pop %v408
    %411 = vrot.lane.b32.xlu0 %v409, 64
    %v412 = vpop.permute.xlu0 %411
    %v414 = vmul.f32 %v397, %v412
    %s415 = scalar_lea.vmem [#allocation4], 40
    %v416 = vld [vmem:[%s415] sm:$0xff]
    %418 = vrot.lane.b32.xlu0 %v414, 32
    %v419 = vpop.permute.xlu0 %418
    %v420 = vsel %vm84, %v419, 0
    %422 = vmatpush.msra.mxu0 0.0
    %423 = vmatpush.msra.mxu0 0.0
    %424 = vmatpush.msra.mxu0 0.0
    %425 = vmatpush.msra.mxu0 0.0
    %426 = vmatpush.msra.mxu0 0.0
    %427 = vmatpush.msra.mxu0 0.0
    %428 = vmatpush.msra.mxu0 0.0
    %429 = vmatpush.msra.mxu0 0.0
    %430 = vmatpush.msra.mxu0 0.0
    %431 = vmatpush.msra.mxu0 0.0
    %432 = vmatpush.msra.mxu0 0.0
    %433 = vmatpush.msra.mxu0 0.0
    %434 = vmatpush.msra.mxu0 %v75
    %435 = vmatpush.msra.mxu0 %v74
    %436 = vmatpush.msra.mxu0 %v73
    %437 = vmatpush.msra.mxu0 %v72
    %438 = vmatmul.f32.gmra.mxu0 %v420
    %v439 = vpop.f32.mrf.mxu0
    %v440 = vadd.f32 0.0, %v439
    %441 = vdwg.mxu0
    %v442 = vadd.f32 %v416, %v440
    %v443 = vtanh.pop %v442
    %v444 = vxor.u32 %v442, 2147483648
    %v445 = vmul.f32 %v444, 1.442695
    %v446 = vpow.pop %v445
    %v447 = vadd.f32 %v446, 1.0
    %v448 = vrcp.pop %v447
    %v449 = vmul.f32 %v447, %v448
    %v450 = vsub.f32 1.0, %v449
    %v451 = vmul.f32 %v448, %v450
    %v452 = vadd.f32 %v448, %v451
    %vm453 = vweird.f32 %v447
    %vm454 = vweird.f32 %v448
    %vm455 = vmor %vm453, %vm454
    %v456 = vsel %vm455, %v448, %v452
    %v457 = vand.u32 2147483647, %v447
    %vm458 = vcmp.eq.f32.partialorder %v457, 8.507059e+37
    %v459 = vand.u32 %v447, 2147483648
    %v460 = vor.u32 1.1754944e-38, %v459
    %v461 = vsel %vm458, %v460, %v456
    %v462 = vmul.f32 1.0, %v461
    %v463 = vsel %vm80, %v443, %v462
    %v464 = vmul.f32 %v463, %v408
    %466 = vrot.lane.b32.xlu0 %v463, 64
    %v467 = vpop.permute.xlu0 %466
    %v469 = vmul.f32 %v463, %v467
    %471 = vrot.lane.b32.xlu0 %v469, 32
    %v472 = vpop.permute.xlu0 %471
    %v474 = vadd.f32 %v464, %v472
    %v475 = vtanh.pop %v474
    %477 = vrot.lane.b32.xlu0 %v475, 64
    %v478 = vpop.permute.xlu0 %477
    %v480 = vmul.f32 %v463, %v478
    %s481 = scalar_lea.vmem [#allocation4], 48
    %v482 = vld [vmem:[%s481] sm:$0xff]
    %484 = vrot.lane.b32.xlu0 %v480, 32
    %v485 = vpop.permute.xlu0 %484
    %v486 = vsel %vm84, %v485, 0
    %488 = vmatpush.msra.mxu0 0.0
    %489 = vmatpush.msra.mxu0 0.0
    %490 = vmatpush.msra.mxu0 0.0
    %491 = vmatpush.msra.mxu0 0.0
    %492 = vmatpush.msra.mxu0 0.0
    %493 = vmatpush.msra.mxu0 0.0
    %494 = vmatpush.msra.mxu0 0.0
    %495 = vmatpush.msra.mxu0 0.0
    %496 = vmatpush.msra.mxu0 0.0
    %497 = vmatpush.msra.mxu0 0.0
    %498 = vmatpush.msra.mxu0 0.0
    %499 = vmatpush.msra.mxu0 0.0
    %500 = vmatpush.msra.mxu0 %v75
    %501 = vmatpush.msra.mxu0 %v74
    %502 = vmatpush.msra.mxu0 %v73
    %503 = vmatpush.msra.mxu0 %v72
    %504 = vmatmul.f32.gmra.mxu0 %v486
    %v505 = vpop.f32.mrf.mxu0
    %v506 = vadd.f32 0.0, %v505
    %507 = vdwg.mxu0
    %v508 = vadd.f32 %v482, %v506
    %v509 = vtanh.pop %v508
    %v510 = vxor.u32 %v508, 2147483648
    %v511 = vmul.f32 %v510, 1.442695
    %v512 = vpow.pop %v511
    %v513 = vadd.f32 %v512, 1.0
    %v514 = vrcp.pop %v513
    %v515 = vmul.f32 %v513, %v514
    %v516 = vsub.f32 1.0, %v515
    %v517 = vmul.f32 %v514, %v516
    %v518 = vadd.f32 %v514, %v517
    %vm519 = vweird.f32 %v513
    %vm520 = vweird.f32 %v514
    %vm521 = vmor %vm519, %vm520
    %v522 = vsel %vm521, %v514, %v518
    %v523 = vand.u32 2147483647, %v513
    %vm524 = vcmp.eq.f32.partialorder %v523, 8.507059e+37
    %v525 = vand.u32 %v513, 2147483648
    %v526 = vor.u32 1.1754944e-38, %v525
    %v527 = vsel %vm524, %v526, %v522
    %v528 = vmul.f32 1.0, %v527
    %v529 = vsel %vm80, %v509, %v528
    %v530 = vmul.f32 %v529, %v474
    %532 = vrot.lane.b32.xlu0 %v529, 64
    %v533 = vpop.permute.xlu0 %532
    %v535 = vmul.f32 %v529, %v533
    %537 = vrot.lane.b32.xlu0 %v535, 32
    %v538 = vpop.permute.xlu0 %537
    %v540 = vadd.f32 %v530, %v538
    %v541 = vtanh.pop %v540
    %543 = vrot.lane.b32.xlu0 %v541, 64
    %v544 = vpop.permute.xlu0 %543
    %v546 = vmul.f32 %v529, %v544
    %s547 = scalar_lea.vmem [#allocation4], 56
    %v548 = vld [vmem:[%s547] sm:$0xff]
    %550 = vrot.lane.b32.xlu0 %v546, 32
    %v551 = vpop.permute.xlu0 %550
    %v552 = vsel %vm84, %v551, 0
    %554 = vmatpush.msra.mxu0 0.0
    %555 = vmatpush.msra.mxu0 0.0
    %556 = vmatpush.msra.mxu0 0.0
    %557 = vmatpush.msra.mxu0 0.0
    %558 = vmatpush.msra.mxu0 0.0
    %559 = vmatpush.msra.mxu0 0.0
    %560 = vmatpush.msra.mxu0 0.0
    %561 = vmatpush.msra.mxu0 0.0
    %562 = vmatpush.msra.mxu0 0.0
    %563 = vmatpush.msra.mxu0 0.0
    %564 = vmatpush.msra.mxu0 0.0
    %565 = vmatpush.msra.mxu0 0.0
    %566 = vmatpush.msra.mxu0 %v75
    %567 = vmatpush.msra.mxu0 %v74
    %568 = vmatpush.msra.mxu0 %v73
    %569 = vmatpush.msra.mxu0 %v72
    %570 = vmatmul.f32.gmra.mxu0 %v552
    %v571 = vpop.f32.mrf.mxu0
    %v572 = vadd.f32 0.0, %v571
    %573 = vdwg.mxu0
    %v574 = vadd.f32 %v548, %v572
    %v575 = vtanh.pop %v574
    %v576 = vxor.u32 %v574, 2147483648
    %v577 = vmul.f32 %v576, 1.442695
    %v578 = vpow.pop %v577
    %v579 = vadd.f32 %v578, 1.0
    %v580 = vrcp.pop %v579
    %v581 = vmul.f32 %v579, %v580
    %v582 = vsub.f32 1.0, %v581
    %v583 = vmul.f32 %v580, %v582
    %v584 = vadd.f32 %v580, %v583
    %vm585 = vweird.f32 %v579
    %vm586 = vweird.f32 %v580
    %vm587 = vmor %vm585, %vm586
    %v588 = vsel %vm587, %v580, %v584
    %v589 = vand.u32 2147483647, %v579
    %vm590 = vcmp.eq.f32.partialorder %v589, 8.507059e+37
    %v591 = vand.u32 %v579, 2147483648
    %v592 = vor.u32 1.1754944e-38, %v591
    %v593 = vsel %vm590, %v592, %v588
    %v594 = vmul.f32 1.0, %v593
    %v595 = vsel %vm80, %v575, %v594
    %v596 = vmul.f32 %v595, %v540
    %598 = vrot.lane.b32.xlu0 %v595, 64
    %v599 = vpop.permute.xlu0 %598
    %v601 = vmul.f32 %v595, %v599
    %603 = vrot.lane.b32.xlu0 %v601, 32
    %v604 = vpop.permute.xlu0 %603
    %v606 = vadd.f32 %v596, %v604
    %v607 = vtanh.pop %v606
    %609 = vrot.lane.b32.xlu0 %v607, 64
    %v610 = vpop.permute.xlu0 %609
    %v612 = vmul.f32 %v595, %v610
    %614 = vrot.lane.b32.xlu0 %v612, 32
    %v615 = vpop.permute.xlu0 %614
    %617 = vst.msk [vmem:[#allocation2] sm:$0xff] %vm84, %v615
    %619 = vrot.lane.b32.xlu0 %v606, 96
    %v620 = vpop.permute.xlu0 %619
    %622 = vst.msk [vmem:[#allocation3] sm:$0xff] %vm84, %v620
    // Predicated region
    $region34: #{tpu_custom_call.1} parent=1 // pred_check
      %p623 = pneg %p65
    $region35: #{tpu_custom_call.1} parent=1 // pred_check_branch
      %625 = sbr.rel (%p623) target = $region37
    $region36: #{tpu_custom_call.1} parent=1 // pred_region
      %v626 = vld [vmem:[#allocation9] sm:$0xff]
      %v627 = vld [vmem:[#allocation9 + $0x8] sm:$0xff]
      %v628 = vld [vmem:[#allocation9 + $0x10] sm:$0xff]
      %v629 = vld [vmem:[#allocation9 + $0x18] sm:$0xff]
      %v630 = vld [vmem:[#allocation2] sm:$0xff]
      %v631 = vld [vmem:[%s3] sm:$0x1]
      %v633 = vperm.slane %v631, 0
      %v636 = vsel %vm84, %v630, 0
      %638 = vmatpush.msra.mxu0 0.0
      %639 = vmatpush.msra.mxu0 0.0
      %640 = vmatpush.msra.mxu0 0.0
      %641 = vmatpush.msra.mxu0 0.0
      %642 = vmatpush.msra.mxu0 0.0
      %643 = vmatpush.msra.mxu0 0.0
      %644 = vmatpush.msra.mxu0 0.0
      %645 = vmatpush.msra.mxu0 0.0
      %646 = vmatpush.msra.mxu0 0.0
      %647 = vmatpush.msra.mxu0 0.0
      %648 = vmatpush.msra.mxu0 0.0
      %649 = vmatpush.msra.mxu0 0.0
      %650 = vmatpush.msra.mxu0 %v629
      %651 = vmatpush.msra.mxu0 %v628
      %652 = vmatpush.msra.mxu0 %v627
      %653 = vmatpush.msra.mxu0 %v626
      %654 = vmatmul.f32.gmra.mxu0 %v636
      %v655 = vpop.f32.mrf.mxu0
      %v656 = vadd.f32 %v633, %v655
      %657 = vdwg.mxu0
      %658 = vst [vmem:[#allocation10] sm:$0xff] %v656
    $region37: #{tpu_custom_call.1} parent=1 // pred_fallthru
      _
    // Predicated region
    $region38: #{tpu_custom_call.1} parent=1 // pred_check
      _
    $region39: #{tpu_custom_call.1} parent=1 // pred_check_branch
      %660 = sbr.rel (0) target = $region41
    $region40: #{tpu_custom_call.1} parent=1 // pred_region
      %662 = vsyncadd [#allocation6], 0
      %s664 = sshll.u32 [#allocation10], 4
      %s665 = int_to_ptr.vmem [resolvable:$true] %s664
      %s666 = sshll.u32 %s4, 4
      %s667 = int_to_ptr.hbm [resolvable:$true] %s666
      %669 = dma.vmem_to_hbm [thread:$0]  %s665, 128, %s667, [#allocation6]
    $region41: #{tpu_custom_call.1} parent=1 // pred_fallthru
      _
    // Predicated region
    $region42: #{tpu_custom_call.1} parent=1 // pred_check
      _
    $region43: #{tpu_custom_call.1} parent=1 // pred_check_branch
      %671 = sbr.rel (0) target = $region45
    $region44: #{tpu_custom_call.1} parent=1 // pred_region
      %673 = dma.done [#allocation6], 128
    $region45: #{tpu_custom_call.1} parent=1 // pred_fallthru
      _
    %674 = vsyncpa [#allocation5], 1
    %675 = vsyncpa [#allocation8], 1
    %676 = vsyncpa [#allocation6], 1

</llo_original>
